<compile_context>
chip_gen: v7x
topology: tpu7x:2x2x1
jax: 0.10.0
libtpu: 0.0.40
codegen_flags: <defaults>
</compile_context>

<pallas_src>
import functools

import jax
import jax.numpy as jnp
from jax import lax
from jax.experimental import pallas as pl
from jax.experimental.pallas import tpu as pltpu

_LANE = 128
_SUBLANE = 8


def _tweedie_kernel(yp_ref, yt_ref, o_ref, *, p):
    # Cast to f32 inside the kernel (inputs arrive in their original dtype).
    yp = jnp.maximum(yp_ref[...].astype(jnp.float32), jnp.float32(1e-4))
    yt = yt_ref[...].astype(jnp.float32)

    # Trace-time constants: multiply instead of vector divide.
    c1 = 1.0 / (1.0 - p)
    c2 = 1.0 / (2.0 - p)

    if p == 1.5:
        # yp^(1-p) = yp^-0.5  ->  single EUP rsqrt
        t = lax.rsqrt(yp)
    else:
        # one log + one exp; yp^(2-p) is formed as yp * t (VPU mul)
        t = jnp.exp((1.0 - p) * jnp.log(yp))

    # loss = -a + b = -(c1 * yt * yp^(1-p)) + c2 * yp^(2-p)
    #      = t * (c2 * yp - c1 * yt)
    loss = (c2 * yp - c1 * yt) * t
    o_ref[...] = loss.astype(o_ref.dtype)


def tweedie_loss(y_pred, y_true, p: float = 1.5, *,
                 block_rows: int = 512, lane_width: int = 512):
    # Matches the PyTorch module's contract; note (like the original) p == 1.0
    # makes the closed form divide by zero.
    assert 1.0 <= p < 2.0, "p must be in range [1, 2)"
    assert y_pred.shape == y_true.shape
    orig_shape = y_pred.shape
    out_dtype = y_pred.dtype

    flat_p = y_pred.reshape(-1)
    flat_t = y_true.reshape(-1)
    n = flat_p.shape[0]

    # Lane width: wide (lane_width) for large inputs, 128 for tiny ones so the
    # small case needs no padding copy.
    W = lane_width if n >= _SUBLANE * lane_width else _LANE
    tile = _SUBLANE * W
    pad = (-n) % tile
    if pad:
        flat_p = jnp.concatenate([flat_p, jnp.ones((pad,), flat_p.dtype)])
        flat_t = jnp.concatenate([flat_t, jnp.zeros((pad,), flat_t.dtype)])
    total = n + pad
    rows = total // W               # multiple of 8 by construction
    yp2 = flat_p.reshape(rows, W)
    yt2 = flat_t.reshape(rows, W)

    # Large fixed row tile; last grid step may be partial (cdiv), no search.
    tm = min(block_rows, rows)      # both multiples of 8
    grid = (pl.cdiv(rows, tm),)

    eup_per_elem = 1 if float(p) == 1.5 else 2
    cost = pl.CostEstimate(
        flops=6 * total,
        transcendentals=eup_per_elem * total,
        bytes_accessed=total * (yp2.dtype.itemsize + yt2.dtype.itemsize
                                + jnp.dtype(out_dtype).itemsize),
    )

    kernel = functools.partial(_tweedie_kernel, p=float(p))
    out2 = pl.pallas_call(
        kernel,
        out_shape=jax.ShapeDtypeStruct((rows, W), out_dtype),
        grid_spec=pltpu.PrefetchScalarGridSpec(
            num_scalar_prefetch=0,
            grid=grid,
            in_specs=[
                pl.BlockSpec((tm, W), lambda i: (i, 0)),
                pl.BlockSpec((tm, W), lambda i: (i, 0)),
            ],
            out_specs=pl.BlockSpec((tm, W), lambda i: (i, 0)),
        ),
        compiler_params=pltpu.CompilerParams(
            dimension_semantics=("parallel",),
        ),
        cost_estimate=cost,
    )(yp2, yt2)

    out = out2.reshape(-1)
    if pad:
        out = out[:n]
    return out.reshape(orig_shape)


def _tweedie_ref(y_pred, y_true, p=1.5):
    yp = jnp.maximum(y_pred.astype(jnp.float32), 1e-4)
    a = y_true.astype(jnp.float32) * jnp.power(yp, 1.0 - p) / (1.0 - p)
    b = jnp.power(yp, 2.0 - p) / (2.0 - p)
    return (-a + b).astype(y_pred.dtype)


if __name__ == "__main__":
    key = jax.random.PRNGKey(0)
    k1, k2 = jax.random.split(key)
    shape = (2, 4, 16, 16)
    # y_pred: arbitrary reals (clip handles negatives); y_true: nonnegative counts
    y_pred = jax.random.normal(k1, shape, dtype=jnp.float32) * 2.0 + 1.0
    y_true = jnp.abs(jax.random.normal(k2, shape, dtype=jnp.float32)) * 3.0

    loss = tweedie_loss(y_pred, y_true, p=1.5)
    jax.block_until_ready(loss)

    ref = _tweedie_ref(y_pred, y_true, p=1.5)
    assert loss.shape == shape and loss.dtype == y_pred.dtype
    assert jnp.allclose(loss, ref, rtol=1e-5, atol=1e-5), "mismatch vs reference"

    print("KERNEL_OK")
</pallas_src>

<mosaic_0001>
module attributes {stable_mosaic.version = 11 : i64} {
  func.func @_tweedie_kernel(%arg0: i32, %arg1: memref<16x128xf32, #tpu.memory_space<vmem>>, %arg2: memref<16x128xf32, #tpu.memory_space<vmem>>, %arg3: memref<16x128xf32, #tpu.memory_space<vmem>>) attributes {dimension_semantics = [#tpu.dimension_semantics<parallel>], iteration_bounds = array<i64: 1>, scalar_prefetch = 0 : i64, scratch_operands = 0 : i64, tpu.core_type = #tpu.core_type<tc>, window_params = [{transform_indices = @transform_0, window_bounds = array<i64: 16, 128>}, {transform_indices = @transform_1, window_bounds = array<i64: 16, 128>}, {transform_indices = @transform_2, window_bounds = array<i64: 16, 128>}]} {
    %c0 = arith.constant 0 : index
    %c0_0 = arith.constant 0 : index
    %0 = vector.load %arg1[%c0, %c0_0] : memref<16x128xf32, #tpu.memory_space<vmem>>, vector<16x128xf32>
    %cst = arith.constant 9.99999974E-5 : f32
    %1 = vector.broadcast %cst : f32 to vector<16x128xf32>
    %2 = arith.maximumf %0, %1 : vector<16x128xf32>
    %c0_1 = arith.constant 0 : index
    %c0_2 = arith.constant 0 : index
    %3 = vector.load %arg2[%c0_1, %c0_2] : memref<16x128xf32, #tpu.memory_space<vmem>>, vector<16x128xf32>
    %4 = math.rsqrt %2 : vector<16x128xf32>
    %cst_3 = arith.constant 2.000000e+00 : f32
    %5 = vector.broadcast %cst_3 : f32 to vector<16x128xf32>
    %6 = arith.mulf %5, %2 : vector<16x128xf32>
    %cst_4 = arith.constant -2.000000e+00 : f32
    %7 = vector.broadcast %cst_4 : f32 to vector<16x128xf32>
    %8 = arith.mulf %7, %3 : vector<16x128xf32>
    %9 = arith.subf %6, %8 : vector<16x128xf32>
    %10 = arith.mulf %9, %4 : vector<16x128xf32>
    %c0_5 = arith.constant 0 : index
    %c0_6 = arith.constant 0 : index
    %11 = vector.load %arg3[%c0_5, %c0_6] : memref<16x128xf32, #tpu.memory_space<vmem>>, vector<16x128xf32>
    tpu.vector_store %arg3[%c0_5, %c0_6], %10 {strides = array<i32>} : memref<16x128xf32, #tpu.memory_space<vmem>>, vector<16x128xf32>,
    return
  }
  func.func @transform_0(%arg0: i32) -> (i32, i32) {
    %c0_i32 = arith.constant 0 : i32
    %c0_i32_0 = arith.constant 0 : i32
    return %arg0, %c0_i32 : i32, i32
  }
  func.func @transform_1(%arg0: i32) -> (i32, i32) {
    %c0_i32 = arith.constant 0 : i32
    %c0_i32_0 = arith.constant 0 : i32
    return %arg0, %c0_i32 : i32, i32
  }
  func.func @transform_2(%arg0: i32) -> (i32, i32) {
    %c0_i32 = arith.constant 0 : i32
    %c0_i32_0 = arith.constant 0 : i32
    return %arg0, %c0_i32 : i32, i32
  }
}

</mosaic_0001>

<llo_original>
// kernel: tpu_custom_call.1
$region0: #{tpu_custom_call.1}
  #allocation0 [shape = 'u32[]', space=smem, size = 0x4, offset = 0x4, fixed_abs, tag = 'smem constant byte address 0x4 - core index']
  #allocation1 [shape = 'u32[144,128]{1,0:T(1,128)}', space=vmem, size = 0x12000, scoped, tag = 'internal scratch']
  %s0 = inlined_call_operand.hbm [shape: f32[16,128], index: 0, kind: input, shape index: {}]
  %s1 = inlined_call_operand.hbm [shape: f32[16,128], index: 1, kind: input, shape index: {}]
  %s2 = inlined_call_operand.hbm [shape: f32[16,128], index: 2, kind: output, shape index: {}]
  %s3 = sld [smem:[#allocation0]]
  $region26: #{tpu_custom_call.1} parent=0
    _
  %s5 = ssub.s32 1, %s3
  %s6 = scalar_select 0, %s5, %s3
  $region1: #{tpu_custom_call.1} parent=0
    #allocation2 [shape = 'u8[8192]{0}', space=vmem, size = 0x2000, scoped, tag = 'input window, operand 0, single buffered']
    #allocation3 [shape = 's32[1]{0}', space=sflag, size = 0x4, scoped, tag = 'scoped memory for tpu_custom_call.1']
    #allocation4 [shape = 's32[1]{0}', space=sflag, size = 0x4, scoped, tag = 'scoped memory for tpu_custom_call.1']
    #allocation5 [shape = 'u8[8192]{0}', space=vmem, size = 0x2000, scoped, tag = 'input window, operand 1, single buffered']
    #allocation6 [shape = 's32[1]{0}', space=sflag, size = 0x4, scoped, tag = 'scoped memory for tpu_custom_call.1']
    #allocation7 [shape = 'u8[8192]{0}', space=vmem, size = 0x2000, scoped, tag = 'output window, operand 0, single buffered']
    %7 = vsyncpa [#allocation3], 0
    %8 = vsyncpa [#allocation6], 0
    %9 = vsyncpa [#allocation4], 0
    // Predicated region
    $region2: #{tpu_custom_call.1} parent=1 // pred_check
      _
    $region3: #{tpu_custom_call.1} parent=1 // pred_check_branch
      %11 = sbr.rel (0) target = $region5
    $region4: #{tpu_custom_call.1} parent=1 // pred_region
      %s13 = ssub.s32 256, 256
      %14 = vsyncadd [#allocation3], %s13
      %s15 = sshll.u32 [#allocation2], 4
      %s16 = int_to_ptr.vmem [resolvable:$true] %s15
      %21 = dma.hbm_to_vmem [thread:$0]  %s0, 256, %s16, [#allocation3], 128, 128, 8
    $region5: #{tpu_custom_call.1} parent=1 // pred_fallthru
      _
    // Predicated region
    $region6: #{tpu_custom_call.1} parent=1 // pred_check
      _
    $region7: #{tpu_custom_call.1} parent=1 // pred_check_branch
      %23 = sbr.rel (0) target = $region9
    $region8: #{tpu_custom_call.1} parent=1 // pred_region
      %s25 = ssub.s32 256, 256
      %26 = vsyncadd [#allocation6], %s25
      %s27 = sshll.u32 [#allocation5], 4
      %s28 = int_to_ptr.vmem [resolvable:$true] %s27
      %33 = dma.hbm_to_vmem [thread:$0]  %s1, 256, %s28, [#allocation6], 128, 128, 8
    $region9: #{tpu_custom_call.1} parent=1 // pred_fallthru
      _
    // Predicated region
    $region10: #{tpu_custom_call.1} parent=1 // pred_check
      _
    $region11: #{tpu_custom_call.1} parent=1 // pred_check_branch
      %35 = sbr.rel (0) target = $region13
    $region12: #{tpu_custom_call.1} parent=1 // pred_region
      %36 = dma.done [#allocation3], 256
    $region13: #{tpu_custom_call.1} parent=1 // pred_fallthru
      _
    // Predicated region
    $region14: #{tpu_custom_call.1} parent=1 // pred_check
      _
    $region15: #{tpu_custom_call.1} parent=1 // pred_check_branch
      %38 = sbr.rel (0) target = $region17
    $region16: #{tpu_custom_call.1} parent=1 // pred_region
      %39 = dma.done [#allocation6], 256
    $region17: #{tpu_custom_call.1} parent=1 // pred_fallthru
      _
    %v40 = vld [vmem:[#allocation2] sm:$0xff]
    %v41 = vld [vmem:[#allocation2 + $0x8] sm:$0xff]
    %v42 = vmax.f32 %v40, 0.0001
    %v43 = vmax.f32 %v41, 0.0001
    %v44 = vld [vmem:[#allocation5] sm:$0xff]
    %v45 = vld [vmem:[#allocation5 + $0x8] sm:$0xff]
    %v46 = vrsqrt.pop %v42
    %v47 = vrsqrt.pop %v43
    %v48 = vmul.f32 %v42, 2.0
    %v49 = vmul.f32 %v43, 2.0
    %v50 = vmul.f32 %v44, -2.0
    %v51 = vmul.f32 %v45, -2.0
    %v52 = vsub.f32 %v48, %v50
    %v53 = vsub.f32 %v49, %v51
    %v54 = vmul.f32 %v52, %v46
    %v55 = vmul.f32 %v53, %v47
    %56 = vst [vmem:[#allocation7] sm:$0xff] %v54
    %57 = vst [vmem:[#allocation7 + $0x8] sm:$0xff] %v55
    // Predicated region
    $region18: #{tpu_custom_call.1} parent=1 // pred_check
      _
    $region19: #{tpu_custom_call.1} parent=1 // pred_check_branch
      %59 = sbr.rel (0) target = $region21
    $region20: #{tpu_custom_call.1} parent=1 // pred_region
      %s61 = ssub.s32 256, 256
      %62 = vsyncadd [#allocation4], %s61
      %s63 = sshll.u32 [#allocation7], 4
      %s64 = int_to_ptr.vmem [resolvable:$true] %s63
      %69 = dma.vmem_to_hbm [thread:$0]  %s64, 256, %s2, [#allocation4], 128, 128, 8
    $region21: #{tpu_custom_call.1} parent=1 // pred_fallthru
      _
    // Predicated region
    $region22: #{tpu_custom_call.1} parent=1 // pred_check
      _
    $region23: #{tpu_custom_call.1} parent=1 // pred_check_branch
      %71 = sbr.rel (0) target = $region25
    $region24: #{tpu_custom_call.1} parent=1 // pred_region
      %72 = dma.done [#allocation4], 256
    $region25: #{tpu_custom_call.1} parent=1 // pred_fallthru
      _
    %73 = vsyncpa [#allocation3], 1
    %74 = vsyncpa [#allocation6], 1
    %75 = vsyncpa [#allocation4], 1

</llo_original>
